<compile_context>
chip_gen: v7x
topology: tpu7x:2x2x1
jax: 0.10.0
libtpu: 0.0.40
codegen_flags: <defaults>
</compile_context>

<pallas_src>
import functools

import jax
import jax.numpy as jnp
from jax.experimental import pallas as pl
from jax.experimental.pallas import tpu as pltpu

_F32 = 4


# ---------------------------------------------------------------------------
# VMEM budgeting (generation aware)
# ---------------------------------------------------------------------------

def _vmem_capacity_bytes():
    try:
        info = pltpu.get_tpu_info()
        cap = getattr(info, "vmem_capacity_bytes", None)
        if cap:
            return int(cap)
    except Exception:
        pass
    return 64 * 1024 * 1024  # conservative (v7x-sized) if the query fails


def _default_vmem_budget():
    cap = _vmem_capacity_bytes()
    if cap >= 100 * 1024 * 1024:
        # v5e / v6e: 128 MiB physical VMEM — keep the read-once single-pass
        # path alive for much larger N (avoids a 1.5x HBM-traffic fallback).
        return 90 * 1024 * 1024, 100 * 1024 * 1024
    # v7x: 64 MiB physical per TensorCore — stay well clear of it.
    return 30 * 1024 * 1024, 48 * 1024 * 1024


def _single_pass_tile_bytes(n, tile_h, x_bytes, out_bytes):
    # Double-buffered input + output tiles plus up to 3 live f32 temporaries
    # (f32 copy of x, centered x, elementwise product) inside the kernel body.
    return n * tile_h * (2 * x_bytes + 2 * out_bytes + 3 * _F32)


def _two_pass_tile_bytes(tile_n, tile_h, x_bytes, out_bytes):
    return tile_n * tile_h * (2 * x_bytes + 2 * out_bytes + 3 * _F32)


# ---------------------------------------------------------------------------
# Tile selection
# ---------------------------------------------------------------------------

def _pick_single_pass_tile_h(n, h, x_bytes, out_bytes, budget):
    """Hidden-tile width for the single-pass path, or None if a full node
    column per hidden tile does not fit the VMEM budget."""
    if h % 128 != 0:
        # Only a full-H block satisfies the (8,128) rule; size-guard it.
        if _single_pass_tile_bytes(n, h, x_bytes, out_bytes) <= budget:
            return h
        return None
    fitting = [t for t in (1024, 512, 256, 128)
               if h % t == 0
               and _single_pass_tile_bytes(n, t, x_bytes, out_bytes) <= budget]
    if not fitting:
        return None
    # Prefer pipeline depth (>=4, then >=2 grid steps) so double-buffering has
    # work to overlap and v7x can shard H tiles across its two TensorCores,
    # while keeping tiles lane-wide (>=256 lanes when possible).
    for min_steps, min_width in ((4, 256), (2, 256), (2, 128)):
        opts = [t for t in fitting if h // t >= min_steps and t >= min_width]
        if opts:
            return max(opts)
    return max(fitting)


def _pick_two_pass_tiles(n, h, x_bytes, out_bytes, budget):
    """(tile_n, tile_h) for the two-pass fallback: widest lane extent first,
    shrink the node tile to fit the budget."""
    if h % 128 != 0:
        tile_h_opts = [h]
    else:
        cands = [t for t in (1024, 512, 256, 128) if h % t == 0]
        # Keep >=2 H tiles when possible so the stats pass (its reduction axis
        # is "arbitrary") can still shard over H on v7x's two TensorCores.
        tile_h_opts = [t for t in cands if h // t >= 2] or cands

    tn_start = 8
    while tn_start < min(n, 2048):
        tn_start *= 2
    tn_start = min(tn_start, 2048)

    for th in tile_h_opts:
        tn = tn_start
        while tn >= 8 and _two_pass_tile_bytes(tn, th, x_bytes, out_bytes) > budget:
            tn //= 2
        if tn >= 8:
            return tn, th
    # Nothing satisfies an (artificially) tiny budget; use the smallest legal
    # tile and let vmem_limit_bytes be the real constraint.
    return 8, tile_h_opts[-1]


# ---------------------------------------------------------------------------
# Kernels
# ---------------------------------------------------------------------------

def _node_bn_tile_kernel(x_ref, gamma_ref, beta_ref, o_ref, *, eps, inv_n):
    """Single pass: full node axis resident for one lane-dense hidden tile."""
    x = x_ref[...].astype(jnp.float32)                     # (N, TILE_H)
    mean = jnp.sum(x, axis=0, keepdims=True) * inv_n       # (1, TILE_H)
    d = x - mean                                           # centered
    var = jnp.sum(d * d, axis=0, keepdims=True) * inv_n    # robust biased var
    inv_std = jax.lax.rsqrt(var + eps)                     # EUP slot (cheap)
    scale = inv_std * gamma_ref[...]                       # gamma kept in f32
    o_ref[...] = (d * scale + beta_ref[...]).astype(o_ref.dtype)


def _node_bn_stats_kernel(x_ref, sum_ref, ssq_ref, *, n, tile_n):
    """Two-pass fallback, pass 1: accumulate per-channel sum / sumsq."""
    i = pl.program_id(1)

    @pl.when(i == 0)
    def _():
        sum_ref[...] = jnp.zeros_like(sum_ref)
        ssq_ref[...] = jnp.zeros_like(ssq_ref)

    x = x_ref[...].astype(jnp.float32)                     # (TILE_N, TILE_H)
    # Mask rows past the true node count (ragged last N tile; no host pad).
    row = jax.lax.broadcasted_iota(jnp.int32, x.shape, 0) + i * tile_n
    x = jnp.where(row < n, x, 0.0)
    sum_ref[...] += jnp.sum(x, axis=0, keepdims=True)
    ssq_ref[...] += jnp.sum(x * x, axis=0, keepdims=True)


def _node_bn_apply_kernel(x_ref, scale_ref, shift_ref, o_ref):
    """Two-pass fallback, pass 2: y = x * scale + shift.

    Rows of the ragged last node tile compute garbage but Pallas drops their
    out-of-bounds output stores, so no mask is needed here."""
    x = x_ref[...].astype(jnp.float32)
    o_ref[...] = (x * scale_ref[...] + shift_ref[...]).astype(o_ref.dtype)


# ---------------------------------------------------------------------------
# Wrapper
# ---------------------------------------------------------------------------

def node_batch_norm(x, gamma, beta, *, eps=1e-5,
                    vmem_budget_bytes=None, vmem_limit_bytes=None):
    """x: (N, H); gamma/beta: (H,).  Returns (N, H) with x.dtype."""
    n, h = x.shape
    default_budget, default_limit = _default_vmem_budget()
    if vmem_budget_bytes is None:
        vmem_budget_bytes = default_budget
    if vmem_limit_bytes is None:
        vmem_limit_bytes = default_limit

    x_bytes = jnp.dtype(x.dtype).itemsize
    out_bytes = x_bytes
    # Keep BN parameters in f32 (matches PyTorch; avoids bf16 round-trips).
    g2 = gamma.reshape(1, h).astype(jnp.float32)
    b2 = beta.reshape(1, h).astype(jnp.float32)

    tile_h = _pick_single_pass_tile_h(n, h, x_bytes, out_bytes, vmem_budget_bytes)

    if tile_h is not None:
        # ---- Single-pass: grid over hidden tiles, full node axis per tile.
        grid = (h // tile_h,)
        cost = pl.CostEstimate(
            flops=7 * n * h,
            transcendentals=h,
            bytes_accessed=n * h * (x_bytes + out_bytes) + 2 * h * _F32,
        )
        return pl.pallas_call(
            functools.partial(_node_bn_tile_kernel, eps=eps, inv_n=1.0 / n),
            out_shape=jax.ShapeDtypeStruct((n, h), x.dtype),
            grid=grid,
            in_specs=[
                pl.BlockSpec((n, tile_h), lambda j: (0, j)),
                pl.BlockSpec((1, tile_h), lambda j: (0, j)),
                pl.BlockSpec((1, tile_h), lambda j: (0, j)),
            ],
            out_specs=pl.BlockSpec((n, tile_h), lambda j: (0, j)),
            compiler_params=pltpu.CompilerParams(
                dimension_semantics=("parallel",),
                vmem_limit_bytes=vmem_limit_bytes,
            ),
            cost_estimate=cost,
        )(x, g2, b2)

    # ---- Two-pass fallback: N too large to keep a full column per H tile.
    tile_n, tile_h2 = _pick_two_pass_tiles(n, h, x_bytes, out_bytes,
                                           vmem_budget_bytes)
    grid2 = (h // tile_h2, pl.cdiv(n, tile_n))

    stats_cost = pl.CostEstimate(
        flops=4 * n * h, transcendentals=0,
        bytes_accessed=n * h * x_bytes + 2 * h * _F32,
    )
    sums, sumsq = pl.pallas_call(
        functools.partial(_node_bn_stats_kernel, n=n, tile_n=tile_n),
        out_shape=(
            jax.ShapeDtypeStruct((1, h), jnp.float32),
            jax.ShapeDtypeStruct((1, h), jnp.float32),
        ),
        grid=grid2,
        in_specs=[pl.BlockSpec((tile_n, tile_h2), lambda j, i: (i, j))],
        out_specs=[
            pl.BlockSpec((1, tile_h2), lambda j, i: (0, j)),
            pl.BlockSpec((1, tile_h2), lambda j, i: (0, j)),
        ],
        compiler_params=pltpu.CompilerParams(
            dimension_semantics=("parallel", "arbitrary"),
            vmem_limit_bytes=vmem_limit_bytes,
        ),
        cost_estimate=stats_cost,
    )(x)

    inv_n = 1.0 / n
    mean = sums * inv_n
    # Note: E[x^2] - mean^2 can lose precision when |mean| >> std; the
    # single-pass path (the common case) uses the centered formula instead.
    var = jnp.maximum(sumsq * inv_n - mean * mean, 0.0)
    inv_std = jax.lax.rsqrt(var + eps)
    scale = inv_std * g2                                   # (1, H) f32
    shift = b2 - mean * scale                              # (1, H) f32

    apply_cost = pl.CostEstimate(
        flops=2 * n * h, transcendentals=0,
        bytes_accessed=n * h * (x_bytes + out_bytes) + 2 * h * _F32,
    )
    return pl.pallas_call(
        _node_bn_apply_kernel,
        out_shape=jax.ShapeDtypeStruct((n, h), x.dtype),
        grid=grid2,
        in_specs=[
            pl.BlockSpec((tile_n, tile_h2), lambda j, i: (i, j)),
            pl.BlockSpec((1, tile_h2), lambda j, i: (0, j)),
            pl.BlockSpec((1, tile_h2), lambda j, i: (0, j)),
        ],
        out_specs=pl.BlockSpec((tile_n, tile_h2), lambda j, i: (i, j)),
        compiler_params=pltpu.CompilerParams(
            dimension_semantics=("parallel", "parallel"),
            vmem_limit_bytes=vmem_limit_bytes,
        ),
        cost_estimate=apply_cost,
    )(x, scale, shift)


# ---------------------------------------------------------------------------
# Reference + tests
# ---------------------------------------------------------------------------

def _reference(x, gamma, beta, eps=1e-5):
    xf = x.astype(jnp.float32)
    mean = jnp.mean(xf, axis=0, keepdims=True)
    var = jnp.mean((xf - mean) ** 2, axis=0, keepdims=True)
    y = (xf - mean) / jnp.sqrt(var + eps) * gamma[None, :].astype(jnp.float32) \
        + beta[None, :].astype(jnp.float32)
    return y.astype(x.dtype)


def _check(x, gamma, beta, atol=1e-4, rtol=1e-4, **kw):
    out = jax.block_until_ready(node_batch_norm(x, gamma, beta, **kw))
    ref = _reference(x, gamma, beta)
    assert out.shape == x.shape
    assert out.dtype == x.dtype
    ok = jnp.allclose(out.astype(jnp.float32), ref.astype(jnp.float32),
                      atol=atol, rtol=rtol)
    assert ok, "mismatch vs reference"
    return out


if __name__ == "__main__":
    key = jax.random.PRNGKey(0)
    k1, k2, k3, k4, k5, k6, k7 = jax.random.split(key, 7)

    # 1) Small shape matching the module's intent (default BN init: gamma=1, beta=0).
    num_nodes, hidden_dim = 16, 32
    x = jax.random.normal(k1, (num_nodes, hidden_dim), dtype=jnp.float32)
    gamma = jnp.ones((hidden_dim,), dtype=jnp.float32)
    beta = jnp.zeros((hidden_dim,), dtype=jnp.float32)
    _check(x, gamma, beta)

    # 2) Lane-dense tiled single-pass path (H multiple of 128, 3 grid steps).
    x2 = jax.random.normal(k2, (40, 384), dtype=jnp.float32)
    g2 = 1.0 + 0.1 * jax.random.normal(k3, (384,), dtype=jnp.float32)
    b2 = 0.1 * jax.random.normal(k4, (384,), dtype=jnp.float32)
    _check(x2, g2, b2)

    # 3) bf16 input, single-pass path.
    x3 = jax.random.normal(k5, (64, 256), dtype=jnp.float32).astype(jnp.bfloat16)
    g3 = jnp.ones((256,), dtype=jnp.float32)
    b3 = jnp.zeros((256,), dtype=jnp.float32)
    _check(x3, g3, b3, atol=0.05, rtol=0.05)

    # 4) Two-pass fallback, ragged node axis (37 % 8 != 0), forced by a tiny
    #    tile budget (the explicit vmem_limit remains the real constraint).
    x4 = jax.random.normal(k6, (37, 256), dtype=jnp.float32)
    g4 = 1.0 + 0.1 * jax.random.normal(k7, (256,), dtype=jnp.float32)
    b4 = 0.1 * jax.random.normal(k3, (256,), dtype=jnp.float32)
    _check(x4, g4, b4, vmem_budget_bytes=4096)

    # 5) Two-pass fallback with H not a multiple of 128 and a ragged node axis.
    x5 = jax.random.normal(k4, (30, 96), dtype=jnp.float32)
    g5 = jnp.ones((96,), dtype=jnp.float32)
    b5 = jnp.zeros((96,), dtype=jnp.float32)
    _check(x5, g5, b5, vmem_budget_bytes=2048)

    print("KERNEL_OK")
</pallas_src>

<mosaic_0001>
module attributes {stable_mosaic.version = 11 : i64} {
  func.func @_node_bn_tile_kernel(%arg0: i32, %arg1: memref<16x32xf32, #tpu.memory_space<vmem>>, %arg2: memref<1x32xf32, #tpu.memory_space<vmem>>, %arg3: memref<1x32xf32, #tpu.memory_space<vmem>>, %arg4: memref<16x32xf32, #tpu.memory_space<vmem>>) attributes {dimension_semantics = [#tpu.dimension_semantics<parallel>], iteration_bounds = array<i64: 1>, scalar_prefetch = 0 : i64, scratch_operands = 0 : i64, tpu.core_type = #tpu.core_type<tc>, window_params = [{transform_indices = @transform_0, window_bounds = array<i64: 16, 32>}, {transform_indices = @transform_1, window_bounds = array<i64: 1, 32>}, {transform_indices = @transform_2, window_bounds = array<i64: 1, 32>}, {transform_indices = @transform_3, window_bounds = array<i64: 16, 32>}]} {
    %c0 = arith.constant 0 : index
    %c0_0 = arith.constant 0 : index
    %0 = vector.load %arg1[%c0, %c0_0] : memref<16x32xf32, #tpu.memory_space<vmem>>, vector<16x32xf32>
    %cst = arith.constant dense<0.000000e+00> : vector<32xf32>
    %1 = vector.multi_reduction <add>, %0, %cst [0] : vector<16x32xf32> to vector<32xf32>
    %2 = vector.shape_cast %1 : vector<32xf32> to vector<1x32xf32>
    %cst_1 = arith.constant 6.250000e-02 : f32
    %3 = vector.broadcast %cst_1 : f32 to vector<1x32xf32>
    %4 = arith.mulf %2, %3 : vector<1x32xf32>
    %5 = vector.broadcast %4 : vector<1x32xf32> to vector<16x32xf32>
    %6 = arith.subf %0, %5 : vector<16x32xf32>
    %7 = arith.mulf %6, %6 : vector<16x32xf32>
    %cst_2 = arith.constant dense<0.000000e+00> : vector<32xf32>
    %8 = vector.multi_reduction <add>, %7, %cst_2 [0] : vector<16x32xf32> to vector<32xf32>
    %9 = vector.shape_cast %8 : vector<32xf32> to vector<1x32xf32>
    %cst_3 = arith.constant 6.250000e-02 : f32
    %10 = vector.broadcast %cst_3 : f32 to vector<1x32xf32>
    %11 = arith.mulf %9, %10 : vector<1x32xf32>
    %cst_4 = arith.constant 9.99999974E-6 : f32
    %12 = vector.broadcast %cst_4 : f32 to vector<1x32xf32>
    %13 = arith.addf %11, %12 : vector<1x32xf32>
    %14 = math.rsqrt %13 : vector<1x32xf32>
    %c0_5 = arith.constant 0 : index
    %c0_6 = arith.constant 0 : index
    %15 = vector.load %arg2[%c0_5, %c0_6] : memref<1x32xf32, #tpu.memory_space<vmem>>, vector<1x32xf32>
    %16 = arith.mulf %14, %15 : vector<1x32xf32>
    %17 = vector.broadcast %16 : vector<1x32xf32> to vector<16x32xf32>
    %18 = arith.mulf %6, %17 : vector<16x32xf32>
    %c0_7 = arith.constant 0 : index
    %c0_8 = arith.constant 0 : index
    %19 = vector.load %arg3[%c0_7, %c0_8] : memref<1x32xf32, #tpu.memory_space<vmem>>, vector<1x32xf32>
    %20 = vector.broadcast %19 : vector<1x32xf32> to vector<16x32xf32>
    %21 = arith.addf %18, %20 : vector<16x32xf32>
    %c0_9 = arith.constant 0 : index
    %c0_10 = arith.constant 0 : index
    %22 = vector.load %arg4[%c0_9, %c0_10] : memref<16x32xf32, #tpu.memory_space<vmem>>, vector<16x32xf32>
    tpu.vector_store %arg4[%c0_9, %c0_10], %21 {strides = array<i32>} : memref<16x32xf32, #tpu.memory_space<vmem>>, vector<16x32xf32>,
    return
  }
  func.func @transform_0(%arg0: i32) -> (i32, i32) {
    %c0_i32 = arith.constant 0 : i32
    %c0_i32_0 = arith.constant 0 : i32
    return %c0_i32, %arg0 : i32, i32
  }
  func.func @transform_1(%arg0: i32) -> (i32, i32) {
    %c0_i32 = arith.constant 0 : i32
    %c0_i32_0 = arith.constant 0 : i32
    return %c0_i32, %arg0 : i32, i32
  }
  func.func @transform_2(%arg0: i32) -> (i32, i32) {
    %c0_i32 = arith.constant 0 : i32
    %c0_i32_0 = arith.constant 0 : i32
    return %c0_i32, %arg0 : i32, i32
  }
  func.func @transform_3(%arg0: i32) -> (i32, i32) {
    %c0_i32 = arith.constant 0 : i32
    %c0_i32_0 = arith.constant 0 : i32
    return %c0_i32, %arg0 : i32, i32
  }
}

</mosaic_0001>

<llo_original>
// kernel: tpu_custom_call.1
$region0: #{tpu_custom_call.1}
  #allocation0 [shape = 'u32[]', space=smem, size = 0x4, offset = 0x4, fixed_abs, tag = 'smem constant byte address 0x4 - core index']
  #allocation1 [shape = 'u32[144,128]{1,0:T(1,128)}', space=vmem, size = 0x12000, scoped, tag = 'internal scratch']
  %s0 = inlined_call_operand.hbm [shape: f32[16,32], index: 0, kind: input, shape index: {}]
  %s1 = inlined_call_operand.vmem [shape: f32[1,32], index: 1, kind: input, shape index: {}]
  %s2 = inlined_call_operand.vmem [shape: f32[1,32], index: 2, kind: input, shape index: {}]
  %s3 = inlined_call_operand.hbm [shape: f32[16,32], index: 3, kind: output, shape index: {}]
  %s4 = sld [smem:[#allocation0]]
  $region26: #{tpu_custom_call.1} parent=0
    _
  %s6 = ssub.s32 1, %s4
  %s7 = scalar_select 0, %s6, %s4
  $region1: #{tpu_custom_call.1} parent=0
    #allocation2 [shape = 'u8[8192]{0}', space=vmem, size = 0x2000, scoped, tag = 'input window, operand 0, single buffered']
    #allocation3 [shape = 's32[1]{0}', space=sflag, size = 0x4, scoped, tag = 'scoped memory for tpu_custom_call.1']
    #allocation4 [shape = 's32[1]{0}', space=sflag, size = 0x4, scoped, tag = 'scoped memory for tpu_custom_call.1']
    #allocation5 [shape = 'u8[8192]{0}', space=vmem, size = 0x2000, scoped, tag = 'output window, operand 0, single buffered']
    %8 = vsyncpa [#allocation3], 0
    %9 = vsyncpa [#allocation4], 0
    // Predicated region
    $region2: #{tpu_custom_call.1} parent=1 // pred_check
      _
    $region3: #{tpu_custom_call.1} parent=1 // pred_check_branch
      %11 = sbr.rel (0) target = $region5
    $region4: #{tpu_custom_call.1} parent=1 // pred_region
      %s13 = ssub.s32 256, 256
      %14 = vsyncadd [#allocation3], %s13
      %s15 = sshll.u32 [#allocation2], 4
      %s16 = int_to_ptr.vmem [resolvable:$true] %s15
      %21 = dma.hbm_to_vmem [thread:$0]  %s0, 256, %s16, [#allocation3], 128, 128, 8
    $region5: #{tpu_custom_call.1} parent=1 // pred_fallthru
      _
    // Predicated region
    $region6: #{tpu_custom_call.1} parent=1 // pred_check
      _
    $region7: #{tpu_custom_call.1} parent=1 // pred_check_branch
      %23 = sbr.rel (0) target = $region9
    $region8: #{tpu_custom_call.1} parent=1 // pred_region
      _
    $region9: #{tpu_custom_call.1} parent=1 // pred_fallthru
      _
    // Predicated region
    $region10: #{tpu_custom_call.1} parent=1 // pred_check
      _
    $region11: #{tpu_custom_call.1} parent=1 // pred_check_branch
      %25 = sbr.rel (0) target = $region13
    $region12: #{tpu_custom_call.1} parent=1 // pred_region
      _
    $region13: #{tpu_custom_call.1} parent=1 // pred_fallthru
      _
    // Predicated region
    $region14: #{tpu_custom_call.1} parent=1 // pred_check
      _
    $region15: #{tpu_custom_call.1} parent=1 // pred_check_branch
      %27 = sbr.rel (0) target = $region17
    $region16: #{tpu_custom_call.1} parent=1 // pred_region
      %28 = dma.done [#allocation3], 256
    $region17: #{tpu_custom_call.1} parent=1 // pred_fallthru
      _
    %v29 = vld [vmem:[#allocation2] sm:$0xff]
    %v30 = vld [vmem:[#allocation2 + $0x8] sm:$0xff]
    %vm31 = vcmask 261120
    %v32 = vsel %vm31, %v29, 0.0
    %v33 = vsel %vm31, %v30, 0.0
    %v34 = vadd.f32 %v32, %v33
    %v35 = vrot.slane %v34, 4
    %v36 = vadd.f32 %v34, %v35
    %v37 = vrot.slane %v36, 2
    %v38 = vadd.f32 %v36, %v37
    %v39 = vrot.slane %v38, 1
    %v40 = vadd.f32 %v38, %v39
    %v41 = vmul.f32 %v40, 0.0625
    %v42 = vsub.f32 %v29, %v41
    %v43 = vsub.f32 %v30, %v41
    %v44 = vmul.f32 %v42, %v42
    %v45 = vmul.f32 %v43, %v43
    %v46 = vsel %vm31, %v44, 0.0
    %v47 = vsel %vm31, %v45, 0.0
    %v48 = vadd.f32 %v46, %v47
    %v49 = vrot.slane %v48, 4
    %v50 = vadd.f32 %v48, %v49
    %v51 = vrot.slane %v50, 2
    %v52 = vadd.f32 %v50, %v51
    %v53 = vrot.slane %v52, 1
    %v54 = vadd.f32 %v52, %v53
    %v55 = vmul.f32 %v54, 0.0625
    %v56 = vadd.f32 %v55, 1e-05
    %v57 = vrsqrt.pop %v56
    %v58 = vld [vmem:[%s1] sm:$0x1]
    %v59 = vmul.f32 %v57, %v58
    %v60 = vlaneseq
    %v61 = vshrl.u32 %v60, 7
    %v62 = vsub.s32 0, %v61
    %v63 = vrot.slane %v59, %v62
    %v64 = vmul.f32 %v42, %v63
    %v65 = vmul.f32 %v43, %v63
    %v66 = vld [vmem:[%s2] sm:$0x1]
    %v68 = vlaneseq
    %v69 = vshrl.u32 %v68, 7
    %v70 = vsub.s32 0, %v69
    %v71 = vrot.slane %v66, %v70
    %v73 = vadd.f32 %v64, %v71
    %v74 = vadd.f32 %v65, %v71
    %75 = vst.msk [vmem:[#allocation5] sm:$0xff] %vm31, %v73
    %76 = vst.msk [vmem:[#allocation5 + $0x8] sm:$0xff] %vm31, %v74
    // Predicated region
    $region18: #{tpu_custom_call.1} parent=1 // pred_check
      _
    $region19: #{tpu_custom_call.1} parent=1 // pred_check_branch
      %78 = sbr.rel (0) target = $region21
    $region20: #{tpu_custom_call.1} parent=1 // pred_region
      %s80 = ssub.s32 256, 256
      %81 = vsyncadd [#allocation4], %s80
      %s82 = sshll.u32 [#allocation5], 4
      %s83 = int_to_ptr.vmem [resolvable:$true] %s82
      %88 = dma.vmem_to_hbm [thread:$0]  %s83, 256, %s3, [#allocation4], 128, 128, 8
    $region21: #{tpu_custom_call.1} parent=1 // pred_fallthru
      _
    // Predicated region
    $region22: #{tpu_custom_call.1} parent=1 // pred_check
      _
    $region23: #{tpu_custom_call.1} parent=1 // pred_check_branch
      %90 = sbr.rel (0) target = $region25
    $region24: #{tpu_custom_call.1} parent=1 // pred_region
      %91 = dma.done [#allocation4], 256
    $region25: #{tpu_custom_call.1} parent=1 // pred_fallthru
      _
    %92 = vsyncpa [#allocation3], 1
    %93 = vsyncpa [#allocation4], 1

</llo_original>
